<compile_context>
chip_gen: v6e
topology: v6e:2x2x1
jax: 0.10.0
libtpu: 0.0.40
codegen_flags: <defaults>
</compile_context>

<pallas_src>
import functools

import jax
import jax.numpy as jnp
from jax.experimental import pallas as pl
from jax.experimental.pallas import tpu as pltpu


def _convblock_kernel(p_ref, w_ref, b_ref, o_ref):
    """Fused conv(im2col matmul) + maxpool + bias + ReLU for one batch block.

    p_ref: (nb, pool*pool, Mp, kh*kw*Cin)  pool-ordered im2col patches
    w_ref: (kh*kw*Cin, Cout_p)             im2col weight matrix
    b_ref: (1, Cout_p)                     bias (f32)
    o_ref: (nb, Mp, Cout_p)                pooled output rows (row = flat hp*wp)
    """
    nb, pp, mp, kflat = p_ref.shape
    cout_p = w_ref.shape[1]

    # One MXU matmul with f32 accumulation. Collapsing (nb, pp, Mp) into one
    # sublane axis is free because Mp is a multiple of the sublane tile.
    lhs = p_ref[...].reshape(nb * pp * mp, kflat)
    acc = jnp.dot(lhs, w_ref[...], preferred_element_type=jnp.float32)
    acc = acc.reshape(nb, pp, mp, cout_p)

    # MaxPool: elementwise max over the pool*pool major axis (VPU only).
    # relu(x + b) is monotonic in x, so pooling before bias+ReLU is equivalent.
    pooled = acc[:, 0]
    for p in range(1, pp):
        pooled = jnp.maximum(pooled, acc[:, p])

    out = jnp.maximum(pooled + b_ref[...], 0.0)        # bias + ReLU, f32 epilogue
    o_ref[...] = out.astype(o_ref.dtype)


def _vmem_capacity_bytes():
    """Per-core VMEM capacity; conservative (v7x, 64 MiB) default if query fails."""
    try:
        info = pltpu.get_tpu_info()
        for attr in ("vmem_capacity_bytes", "vmem_size_bytes", "vmem_bytes"):
            val = getattr(info, attr, None)
            if val:
                return int(val)
    except Exception:
        pass
    return 64 * 1024 * 1024


def _pick_batch_block(n, per_elem_bytes, fixed_bytes, budget_bytes):
    """Largest nb dividing n with >= min(8, n) grid steps that fits the VMEM budget."""
    target_steps = min(8, n)
    nb_cap = max(1, n // target_steps)
    best = 1
    for nb in range(1, nb_cap + 1):
        if n % nb == 0 and fixed_bytes + nb * per_elem_bytes <= budget_bytes:
            best = nb
    return best


def _im2col_pool_patches(x_nhwc, kh, kw, pool, mp):
    """Pool-ordered im2col patches of shape (N, pool*pool, Mp, kh*kw*Cin).

    Row r = oh_p*wp + ow_p of slab (di*pool + dj) is the conv patch for output
    position (pool*oh_p + di, pool*ow_p + dj); rows >= hp*wp are zero padding.
    Hoisted to the wrapper (plain XLA): lane-axis packing of Cin-wide pieces
    inside the kernel would be XLU/relayout bound for small Cin.
    """
    n, h, w, cin = x_nhwc.shape
    ho, wo = h - kh + 1, w - kw + 1
    hp, wp = ho // pool, wo // pool
    kflat = kh * kw * cin
    pieces = [x_nhwc[:, dh:dh + ho, dw:dw + wo, :]
              for dh in range(kh) for dw in range(kw)]
    pat = jnp.concatenate(pieces, axis=-1)                 # (N, ho, wo, kflat)
    pat = pat[:, :hp * pool, :wp * pool, :]                # floor-pool truncation
    pat = pat.reshape(n, hp, pool, wp, pool, kflat)
    pat = pat.transpose(0, 2, 4, 1, 3, 5)                  # (N, pool, pool, hp, wp, K)
    pat = pat.reshape(n, pool * pool, hp * wp, kflat)
    if mp > hp * wp:
        pat = jnp.pad(pat, ((0, 0), (0, 0), (0, mp - hp * wp), (0, 0)))
    return pat


def conv_block(x_nchw, weight, bias, *, pool_size=2, compute_dtype=None):
    """Conv2d(valid, stride 1) + ReLU + MaxPool2d(pool_size), PyTorch semantics.

    x_nchw: (N, Cin, H, W); weight: (Cout, Cin, KH, KW); bias: (Cout,).
    compute_dtype: matmul operand dtype (bf16 recommended on v6e/v7x);
    accumulation and the bias/ReLU/pool epilogue always run in f32.
    """
    n, cin, h, w = x_nchw.shape
    cout, cin_w, kh, kw = weight.shape
    assert cin_w == cin, "weight Cin mismatch"
    ho, wo = h - kh + 1, w - kw + 1
    hp, wp = ho // pool_size, wo // pool_size
    if ho <= 0 or wo <= 0 or hp <= 0 or wp <= 0:
        raise ValueError("Degenerate ConvBlock shape: empty conv or pooled output.")

    dt = compute_dtype if compute_dtype is not None else x_nchw.dtype
    dt_bytes = jnp.dtype(dt).itemsize
    out_dtype = x_nchw.dtype
    out_bytes = jnp.dtype(out_dtype).itemsize

    kflat = kh * kw * cin
    pp = pool_size * pool_size
    # Pad the per-(batch, pool-offset) row count to a multiple of 16 so the
    # in-kernel (nb, pp, Mp, K) <-> (nb*pp*Mp, K) merges/splits stay aligned to
    # the sublane tile for both f32 (8) and bf16 (16) layouts.
    mp = ((hp * wp + 15) // 16) * 16

    # Lane-dense Cout only when it doesn't blow up the HBM writeback
    # (Cout=8 padded to 128 would be a 16x write amplification).
    cout_p = ((cout + 127) // 128) * 128 if cout >= 128 else cout

    # NCHW -> NHWC at the PyTorch-facing boundary; drop both transposes if the
    # surrounding model can run NHWC end-to-end.
    x_nhwc = jnp.transpose(x_nchw, (0, 2, 3, 1)).astype(dt)
    patches = _im2col_pool_patches(x_nhwc, kh, kw, pool_size, mp)

    w_hwio = jnp.transpose(weight, (2, 3, 1, 0)).astype(dt)   # (KH, KW, Cin, Cout)
    if cout_p != cout:
        w_hwio = jnp.pad(w_hwio, ((0, 0), (0, 0), (0, 0), (0, cout_p - cout)))
    w_mat = w_hwio.reshape(kflat, cout_p)
    b_row = bias.astype(jnp.float32)
    if cout_p != cout:
        b_row = jnp.pad(b_row, (0, cout_p - cout))
    b_row = b_row.reshape(1, cout_p)

    # --- generation-aware VMEM sizing & batch blocking ------------------------
    cap = _vmem_capacity_bytes()                       # 64 MiB v7x, 128 MiB v5e/v6e
    vmem_limit = max(32 << 20, min(int(cap * 0.75), 100 << 20))
    block_budget = int(cap * 0.55)                     # headroom for compiler scratch
    per_elem = (2 * pp * mp * kflat * dt_bytes         # double-buffered patches block
                + pp * mp * cout_p * 4                 # f32 matmul accumulator
                + 2 * mp * cout_p * 4                  # pooling/epilogue temporaries
                + 2 * mp * cout_p * out_bytes)         # double-buffered output block
    fixed = 2 * (kflat * cout_p * dt_bytes + cout_p * 4)   # resident weights + bias
    nb = _pick_batch_block(n, per_elem, fixed, block_budget)
    grid = (n // nb,)
    # TODO(synk): if the per-element working set exceeds the budget even at
    # nb=1 (large images on v7x's 64 MiB VMEM), tile H with a (kh-1)-row halo
    # (Element index_map or pl.ANY HBM ref + manual double-buffered DMA).

    out_flat = pl.pallas_call(
        _convblock_kernel,
        out_shape=jax.ShapeDtypeStruct((n, mp, cout_p), out_dtype),
        grid_spec=pltpu.PrefetchScalarGridSpec(
            num_scalar_prefetch=0,
            grid=grid,
            in_specs=[
                pl.BlockSpec((nb, pp, mp, kflat), lambda i: (i, 0, 0, 0)),
                # Weights / bias are grid-invariant and stay VMEM-resident.
                pl.BlockSpec((kflat, cout_p), lambda i: (0, 0)),
                pl.BlockSpec((1, cout_p), lambda i: (0, 0)),
            ],
            out_specs=pl.BlockSpec((nb, mp, cout_p), lambda i: (i, 0, 0)),
        ),
        compiler_params=pltpu.CompilerParams(
            dimension_semantics=("parallel",),
            vmem_limit_bytes=vmem_limit,
        ),
    )(patches, w_mat, b_row)

    # Drop row/channel padding and return NCHW (fused by XLA into one pass).
    out = out_flat[:, :hp * wp, :cout].reshape(n, hp, wp, cout)
    return jnp.transpose(out, (0, 3, 1, 2))


if __name__ == "__main__":
    # Small shapes consistent with the module's forward pass.
    N, CIN, H, W = 2, 4, 16, 16
    COUT, K, POOL = 8, 3, 2

    key = jax.random.PRNGKey(0)
    kx, kw_, kb = jax.random.split(key, 3)

    x = jax.random.normal(kx, (N, CIN, H, W), dtype=jnp.float32)
    # Deterministic synthetic params (Conv2d-like uniform init), not a checkpoint.
    fan_in = CIN * K * K
    bound = 1.0 / (fan_in ** 0.5)
    weight = jax.random.uniform(kw_, (COUT, CIN, K, K), jnp.float32, -bound, bound)
    bias = jax.random.uniform(kb, (COUT,), jnp.float32, -bound, bound)

    # Pure-JAX reference (high-precision conv so the check is meaningful).
    conv_ref = jax.lax.conv_general_dilated(
        x, weight, window_strides=(1, 1), padding="VALID",
        dimension_numbers=("NCHW", "OIHW", "NCHW"),
        precision=jax.lax.Precision.HIGHEST)
    relu_ref = jnp.maximum(conv_ref + bias[None, :, None, None], 0.0)
    pool_ref = jax.lax.reduce_window(
        relu_ref, -jnp.inf, jax.lax.max,
        window_dimensions=(1, 1, POOL, POOL),
        window_strides=(1, 1, POOL, POOL), padding="VALID")
    out_shape = (N, COUT, (H - K + 1) // POOL, (W - K + 1) // POOL)

    # f32 operand path (default).
    out_f32 = jax.jit(lambda a, b, c: conv_block(a, b, c, pool_size=POOL))(
        x, weight, bias)
    out_f32 = jax.block_until_ready(out_f32)
    assert out_f32.shape == out_shape
    assert jnp.allclose(out_f32, pool_ref, atol=2e-2, rtol=2e-2), (
        "f32 path max abs err %.3e" % float(jnp.max(jnp.abs(out_f32 - pool_ref))))

    # bf16 operand path (recommended on v6e/v7x); looser tolerance for bf16 rounding.
    out_bf16 = jax.jit(lambda a, b, c: conv_block(
        a, b, c, pool_size=POOL, compute_dtype=jnp.bfloat16))(x, weight, bias)
    out_bf16 = jax.block_until_ready(out_bf16)
    assert out_bf16.shape == out_shape
    assert jnp.allclose(out_bf16, pool_ref, atol=5e-2, rtol=5e-2), (
        "bf16 path max abs err %.3e" % float(jnp.max(jnp.abs(out_bf16 - pool_ref))))

    print("KERNEL_OK")
</pallas_src>

<mosaic_0001>
module attributes {stable_mosaic.version = 11 : i64} {
  func.func @_convblock_kernel(%arg0: i32, %arg1: memref<1x4x64x36xf32, #tpu.memory_space<vmem>>, %arg2: memref<36x8xf32, #tpu.memory_space<vmem>>, %arg3: memref<1x8xf32, #tpu.memory_space<vmem>>, %arg4: memref<1x64x8xf32, #tpu.memory_space<vmem>>) attributes {dimension_semantics = [#tpu.dimension_semantics<parallel>], iteration_bounds = array<i64: 2>, scalar_prefetch = 0 : i64, scratch_operands = 0 : i64, tpu.core_type = #tpu.core_type<tc>, window_params = [{transform_indices = @transform_0, window_bounds = array<i64: 1, 4, 64, 36>}, {pipeline_mode = #tpu.pipeline_mode<synchronous>, transform_indices = @transform_1, window_bounds = array<i64: 36, 8>}, {pipeline_mode = #tpu.pipeline_mode<synchronous>, transform_indices = @transform_2, window_bounds = array<i64: 1, 8>}, {transform_indices = @transform_3, window_bounds = array<i64: 1, 64, 8>}]} {
    %c0 = arith.constant 0 : index
    %c0_0 = arith.constant 0 : index
    %c0_1 = arith.constant 0 : index
    %c0_2 = arith.constant 0 : index
    %0 = vector.load %arg1[%c0, %c0_0, %c0_1, %c0_2] : memref<1x4x64x36xf32, #tpu.memory_space<vmem>>, vector<1x4x64x36xf32>
    %1 = vector.shape_cast %0 : vector<1x4x64x36xf32> to vector<256x36xf32>
    %c0_3 = arith.constant 0 : index
    %c0_4 = arith.constant 0 : index
    %2 = vector.load %arg2[%c0_3, %c0_4] : memref<36x8xf32, #tpu.memory_space<vmem>>, vector<36x8xf32>
    %cst = arith.constant dense<0.000000e+00> : vector<256x8xf32>
    %3 = tpu.matmul %1, %2, %cst {dimension_numbers = #tpu.dot_dimension_numbers<[1], [0], [0], [1], [0, 0, 1, 1], [], []>} : vector<256x36xf32>, vector<36x8xf32>, vector<256x8xf32> -> vector<256x8xf32>
    %4 = vector.shape_cast %3 : vector<256x8xf32> to vector<1x4x64x8xf32>
    %5 = vector.extract_strided_slice %4 {offsets = [0, 0, 0, 0], sizes = [1, 1, 64, 8], strides = [1, 1, 1, 1]} : vector<1x4x64x8xf32> to vector<1x1x64x8xf32>
    %6 = vector.shape_cast %5 : vector<1x1x64x8xf32> to vector<1x64x8xf32>
    %7 = vector.extract_strided_slice %4 {offsets = [0, 1, 0, 0], sizes = [1, 1, 64, 8], strides = [1, 1, 1, 1]} : vector<1x4x64x8xf32> to vector<1x1x64x8xf32>
    %8 = vector.shape_cast %7 : vector<1x1x64x8xf32> to vector<1x64x8xf32>
    %9 = arith.maximumf %6, %8 : vector<1x64x8xf32>
    %10 = vector.extract_strided_slice %4 {offsets = [0, 2, 0, 0], sizes = [1, 1, 64, 8], strides = [1, 1, 1, 1]} : vector<1x4x64x8xf32> to vector<1x1x64x8xf32>
    %11 = vector.shape_cast %10 : vector<1x1x64x8xf32> to vector<1x64x8xf32>
    %12 = arith.maximumf %9, %11 : vector<1x64x8xf32>
    %13 = vector.extract_strided_slice %4 {offsets = [0, 3, 0, 0], sizes = [1, 1, 64, 8], strides = [1, 1, 1, 1]} : vector<1x4x64x8xf32> to vector<1x1x64x8xf32>
    %14 = vector.shape_cast %13 : vector<1x1x64x8xf32> to vector<1x64x8xf32>
    %15 = arith.maximumf %12, %14 : vector<1x64x8xf32>
    %c0_5 = arith.constant 0 : index
    %c0_6 = arith.constant 0 : index
    %16 = vector.load %arg3[%c0_5, %c0_6] : memref<1x8xf32, #tpu.memory_space<vmem>>, vector<1x8xf32>
    %17 = vector.shape_cast %16 : vector<1x8xf32> to vector<1x1x8xf32>
    %18 = vector.broadcast %17 : vector<1x1x8xf32> to vector<1x64x8xf32>
    %19 = arith.addf %15, %18 : vector<1x64x8xf32>
    %cst_7 = arith.constant 0.000000e+00 : f32
    %20 = vector.broadcast %cst_7 : f32 to vector<1x64x8xf32>
    %21 = arith.maximumf %19, %20 : vector<1x64x8xf32>
    %c0_8 = arith.constant 0 : index
    %c0_9 = arith.constant 0 : index
    %c0_10 = arith.constant 0 : index
    %22 = vector.load %arg4[%c0_8, %c0_9, %c0_10] : memref<1x64x8xf32, #tpu.memory_space<vmem>>, vector<1x64x8xf32>
    tpu.vector_store %arg4[%c0_8, %c0_9, %c0_10], %21 {strides = array<i32>} : memref<1x64x8xf32, #tpu.memory_space<vmem>>, vector<1x64x8xf32>,
    return
  }
  func.func @transform_0(%arg0: i32) -> (i32, i32, i32, i32) {
    %c0_i32 = arith.constant 0 : i32
    %c0_i32_0 = arith.constant 0 : i32
    %c0_i32_1 = arith.constant 0 : i32
    %c0_i32_2 = arith.constant 0 : i32
    return %arg0, %c0_i32, %c0_i32_0, %c0_i32_1 : i32, i32, i32, i32
  }
  func.func @transform_1(%arg0: i32) -> (i32, i32) {
    %c0_i32 = arith.constant 0 : i32
    %c0_i32_0 = arith.constant 0 : i32
    %c0_i32_1 = arith.constant 0 : i32
    return %c0_i32, %c0_i32_0 : i32, i32
  }
  func.func @transform_2(%arg0: i32) -> (i32, i32) {
    %c0_i32 = arith.constant 0 : i32
    %c0_i32_0 = arith.constant 0 : i32
    %c0_i32_1 = arith.constant 0 : i32
    return %c0_i32, %c0_i32_0 : i32, i32
  }
  func.func @transform_3(%arg0: i32) -> (i32, i32, i32) {
    %c0_i32 = arith.constant 0 : i32
    %c0_i32_0 = arith.constant 0 : i32
    %c0_i32_1 = arith.constant 0 : i32
    return %arg0, %c0_i32, %c0_i32_0 : i32, i32, i32
  }
}

</mosaic_0001>

<llo_original>
// kernel: _lambda_.1
$region0: #{_lambda_.1}
  #allocation0 [shape = 'u32[]', space=smem, size = 0x4, offset = 0x4, fixed_abs, tag = 'smem constant byte address 0x4 - core index']
  #allocation1 [shape = 'u32[144,128]{1,0:T(1,128)}', space=vmem, size = 0x12000, scoped, tag = 'internal scratch']
  %s0 = inlined_call_operand.vmem [shape: f32[2,4,64,36], index: 0, kind: input, shape index: {}]
  %s1 = inlined_call_operand.vmem [shape: f32[36,8], index: 1, kind: input, shape index: {}]
  %s2 = inlined_call_operand.vmem [shape: f32[1,8], index: 2, kind: input, shape index: {}]
  %s3 = inlined_call_operand.vmem [shape: f32[2,64,8], index: 3, kind: output, shape index: {}]
  %s4 = sld [smem:[#allocation0]]
  $region45: #{_lambda_.1} parent=0
    _
  %s6 = ssub.s32 1, %s4
  %s7 = scalar_select 0, %s6, %s4
  loop: start=0, step=1, limit=4
  $region2: #{_lambda_.1} parent=0 // loop_pre_header
    _
  $region3: #{_lambda_.1} parent=0 // loop_header
    %s9 = sphi 0, %s13
    %p10 = scmp.ge.s32.totalorder %s9, 4
    %s19 = sphi 0, %s21
    %s22 = sphi 0, %s19
    %s23 = sphi 0, %s22
    %s39 = sphi 0, %s23
    %s43 = sphi 0, %s43
    %s45 = sphi 0, %s43
    %s46 = sphi 0, %s45
    %s60 = sphi 0, %s46
    %s64 = sphi 0, %s64
    %s66 = sphi 0, %s64
    %s67 = sphi 0, %s66
    %s81 = sphi 0, %s67
    %s87 = sphi 0, %s89
    %s90 = sphi 0, %s87
    %s91 = sphi 0, %s90
    %s107 = sphi 0, %s91
  $region4: #{_lambda_.1} parent=0 // loop_header_branch
    %12 = sbr.rel (%p10) target = $region8
  $region5: #{_lambda_.1} parent=0 // loop_body
    %s14 = ssub.s32 %s9, 1
    %s15 = ssub.s32 %s9, 2
    %s16 = sadd.s32 %s9, 1
    %s17 = ssub.s32 %s9, %s16
    %p18 = scmp.eq.s32.totalorder %s17, 0
    %s20 = sadd.s32 %s19, 1
    %s21 = scalar_select %p18, %s19, %s20
    %p24 = pneg %p18
    %p25 = scmp.eq.s32.totalorder %s9, 1
    %p26 = por %p24, %p25
    %p27 = scmp.ne.s32.totalorder %s19, %s22
    %p28 = scmp.eq.s32.totalorder %s9, 0
    %p29 = por %p27, %p28
    %p30 = scmp.ne.s32.totalorder %s19, %s22
    %p31 = scmp.eq.s32.totalorder %s14, 1
    %p32 = por %p30, %p31
    %p33 = scmp.ne.s32.totalorder %s22, %s23
    %p34 = scmp.eq.s32.totalorder %s14, 0
    %p35 = por %p33, %p34
    %p36 = scmp.ne.s32.totalorder %s22, %s23
    %p37 = scmp.eq.s32.totalorder %s15, 1
    %p38 = por %p36, %p37
    %p40 = scmp.ne.s32.totalorder %s23, %s39
    %p41 = scmp.eq.s32.totalorder %s15, 0
    %p42 = por %p40, %p41
    %s44 = sadd.s32 %s43, 1
    %p47 = scmp.eq.s32.totalorder %s9, 1
    %p48 = scmp.ne.s32.totalorder %s43, %s45
    %p49 = scmp.eq.s32.totalorder %s9, 0
    %p50 = por %p48, %p49
    %p51 = scmp.ne.s32.totalorder %s43, %s45
    %p52 = scmp.eq.s32.totalorder %s14, 1
    %p53 = por %p51, %p52
    %p54 = scmp.ne.s32.totalorder %s45, %s46
    %p55 = scmp.eq.s32.totalorder %s14, 0
    %p56 = por %p54, %p55
    %p57 = scmp.ne.s32.totalorder %s45, %s46
    %p58 = scmp.eq.s32.totalorder %s15, 1
    %p59 = por %p57, %p58
    %p61 = scmp.ne.s32.totalorder %s46, %s60
    %p62 = scmp.eq.s32.totalorder %s15, 0
    %p63 = por %p61, %p62
    %s65 = sadd.s32 %s64, 1
    %p68 = scmp.eq.s32.totalorder %s9, 1
    %p69 = scmp.ne.s32.totalorder %s64, %s66
    %p70 = scmp.eq.s32.totalorder %s9, 0
    %p71 = por %p69, %p70
    %p72 = scmp.ne.s32.totalorder %s64, %s66
    %p73 = scmp.eq.s32.totalorder %s14, 1
    %p74 = por %p72, %p73
    %p75 = scmp.ne.s32.totalorder %s66, %s67
    %p76 = scmp.eq.s32.totalorder %s14, 0
    %p77 = por %p75, %p76
    %p78 = scmp.ne.s32.totalorder %s66, %s67
    %p79 = scmp.eq.s32.totalorder %s15, 1
    %p80 = por %p78, %p79
    %p82 = scmp.ne.s32.totalorder %s67, %s81
    %p83 = scmp.eq.s32.totalorder %s15, 0
    %p84 = por %p82, %p83
    %s85 = ssub.s32 %s9, %s16
    %p86 = scmp.eq.s32.totalorder %s85, 0
    %s88 = sadd.s32 %s87, 1
    %s89 = scalar_select %p86, %s87, %s88
    %p92 = pneg %p86
    %p93 = scmp.eq.s32.totalorder %s9, 1
    %p94 = por %p92, %p93
    %p95 = scmp.ne.s32.totalorder %s87, %s90
    %p96 = scmp.eq.s32.totalorder %s9, 0
    %p97 = por %p95, %p96
    %p98 = scmp.ne.s32.totalorder %s87, %s90
    %p99 = scmp.eq.s32.totalorder %s14, 1
    %p100 = por %p98, %p99
    %p101 = scmp.ne.s32.totalorder %s90, %s91
    %p102 = scmp.eq.s32.totalorder %s14, 0
    %p103 = por %p101, %p102
    %p104 = scmp.ne.s32.totalorder %s90, %s91
    %p105 = scmp.eq.s32.totalorder %s15, 1
    %p106 = por %p104, %p105
    %p108 = scmp.ne.s32.totalorder %s91, %s107
    %p109 = scmp.eq.s32.totalorder %s15, 0
    %p110 = por %p108, %p109
    %p111 = scmp.le.s32.totalorder 1, %s9
    %p112 = scmp.lt.s32.totalorder %s9, 3
    %p113 = pnand %p111, %p112
    %p114 = pneg %p113
    // Predicated region
    $region9: #{_lambda_.1} parent=5 // pred_check
      _
    $region10: #{_lambda_.1} parent=5 // pred_check_branch
      %116 = sbr.rel (%p113) target = $region12
    $region11: #{_lambda_.1} parent=5 // pred_region
      %s117 = ssub.s32 %s9, 1
      // Predicated region
      $region13: #{_lambda_.1} parent=11 // pred_check
        %p118 = pneg %p56
      $region14: #{_lambda_.1} parent=11 // pred_check_branch
        %120 = sbr.rel (%p118) target = $region16
      $region15: #{_lambda_.1} parent=11 // pred_region
        _
      $region16: #{_lambda_.1} parent=11 // pred_fallthru
        _
      // Predicated region
      $region17: #{_lambda_.1} parent=11 // pred_check
        %p121 = pneg %p77
      $region18: #{_lambda_.1} parent=11 // pred_check_branch
        %123 = sbr.rel (%p121) target = $region20
      $region19: #{_lambda_.1} parent=11 // pred_region
        _
      $region20: #{_lambda_.1} parent=11 // pred_fallthru
        _
    $region12: #{_lambda_.1} parent=5 // pred_fallthru
      _
    %p124 = scmp.lt.s32.totalorder %s9, 2
    // Predicated region
    $region21: #{_lambda_.1} parent=5 // pred_check
      %p125 = pneg %p124
    $region22: #{_lambda_.1} parent=5 // pred_check_branch
      %127 = sbr.rel (%p125) target = $region24
    $region23: #{_lambda_.1} parent=5 // pred_region
      // Predicated region
      $region25: #{_lambda_.1} parent=23 // pred_check
        %p128 = pneg %p29
      $region26: #{_lambda_.1} parent=23 // pred_check_branch
        %130 = sbr.rel (%p128) target = $region28
      $region27: #{_lambda_.1} parent=23 // pred_region
        %p131 = scmp.lt.s32.totalorder %s9, 1
        %s132 = scalar_select %p131, %s9, 1
        %s133 = smul.addr %s132, 32
        %s134 = smul.addr %s133, 8
        %s135 = scalar_lea.vmem %s0, %s134
      $region28: #{_lambda_.1} parent=23 // pred_fallthru
        _
    $region24: #{_lambda_.1} parent=5 // pred_fallthru
      _
    %p136 = scmp.le.s32.totalorder 1, %s9
    %p137 = scmp.lt.s32.totalorder %s9, 3
    %p138 = pnand %p136, %p137
    %p139 = pneg %p138
    // Predicated region
    $region29: #{_lambda_.1} parent=5 // pred_check
      _
    $region30: #{_lambda_.1} parent=5 // pred_check_branch
      %141 = sbr.rel (%p138) target = $region32
    $region31: #{_lambda_.1} parent=5 // pred_region
      %s142 = ssub.s32 %s9, 1
      %p143 = scmp.lt.s32.totalorder %s14, 1
      %s144 = scalar_select %p143, %s14, 1
      %s145 = smul.addr %s144, 32
      %s146 = smul.addr %s145, 8
      %s147 = scalar_lea.vmem %s0, %s146
      %p148 = pneg %p35
      %p149 = pneg %p32
      %p150 = pneg %p56
      %p151 = pneg %p53
      %p152 = pneg %p77
      %p153 = pneg %p74
      %p154 = pneg %p103
      %p155 = pneg %p100
      %p156 = scmp.lt.s32.totalorder %s14, 1
      %s157 = scalar_select %p156, %s14, 1
      %s158 = smul.addr %s157, 8
      %s159 = smul.addr %s158, 8
      %s160 = scalar_lea.vmem %s3, %s159
      %p161 = scmp.lt.s32.totalorder %s14, 1
      %s162 = scalar_select %p161, %s14, 1
      %s163 = smul.addr %s162, 32
      %s164 = smul.addr %s163, 8
      %s165 = scalar_lea.vmem %s0, %s164
      %p166 = scmp.lt.s32.totalorder %s14, 1
      %s167 = scalar_select %p166, %s14, 1
      %s168 = smul.addr %s167, 8
      %s169 = smul.addr %s168, 8
      %s170 = scalar_lea.vmem %s3, %s169
      %v171 = vld [vmem:[%s165] sm:$0xff]
      %v172 = vld [vmem:[%s165 + $0x8] sm:$0xff]
      %v173 = vld [vmem:[%s165 + $0x10] sm:$0xff]
      %v174 = vld [vmem:[%s165 + $0x18] sm:$0xff]
      %v175 = vld [vmem:[%s165 + $0x20] sm:$0xff]
      %v176 = vld [vmem:[%s165 + $0x28] sm:$0xff]
      %v177 = vld [vmem:[%s165 + $0x30] sm:$0xff]
      %v178 = vld [vmem:[%s165 + $0x38] sm:$0xff]
      %v179 = vld [vmem:[%s165 + $0x40] sm:$0xff]
      %v180 = vld [vmem:[%s165 + $0x48] sm:$0xff]
      %v181 = vld [vmem:[%s165 + $0x50] sm:$0xff]
      %v182 = vld [vmem:[%s165 + $0x58] sm:$0xff]
      %v183 = vld [vmem:[%s165 + $0x60] sm:$0xff]
      %v184 = vld [vmem:[%s165 + $0x68] sm:$0xff]
      %v185 = vld [vmem:[%s165 + $0x70] sm:$0xff]
      %v186 = vld [vmem:[%s165 + $0x78] sm:$0xff]
      %v187 = vld [vmem:[%s165 + $0x80] sm:$0xff]
      %v188 = vld [vmem:[%s165 + $0x88] sm:$0xff]
      %v189 = vld [vmem:[%s165 + $0x90] sm:$0xff]
      %v190 = vld [vmem:[%s165 + $0x98] sm:$0xff]
      %v191 = vld [vmem:[%s165 + $0xa0] sm:$0xff]
      %v192 = vld [vmem:[%s165 + $0xa8] sm:$0xff]
      %v193 = vld [vmem:[%s165 + $0xb0] sm:$0xff]
      %v194 = vld [vmem:[%s165 + $0xb8] sm:$0xff]
      %v195 = vld [vmem:[%s165 + $0xc0] sm:$0xff]
      %v196 = vld [vmem:[%s165 + $0xc8] sm:$0xff]
      %v197 = vld [vmem:[%s165 + $0xd0] sm:$0xff]
      %v198 = vld [vmem:[%s165 + $0xd8] sm:$0xff]
      %v199 = vld [vmem:[%s165 + $0xe0] sm:$0xff]
      %v200 = vld [vmem:[%s165 + $0xe8] sm:$0xff]
      %v201 = vld [vmem:[%s165 + $0xf0] sm:$0xff]
      %v202 = vld [vmem:[%s165 + $0xf8] sm:$0xff]
      %v203 = vld [vmem:[%s1] sm:$0xff]
      %v204 = vld [vmem:[%s1 + $0x8] sm:$0xff]
      %v205 = vld [vmem:[%s1 + $0x10] sm:$0xff]
      %v206 = vld [vmem:[%s1 + $0x18] sm:$0xff]
      %v207 = vld [vmem:[%s1 + $0x20] sm:$0xf]
      %vm208 = vcmask 293888
      %v210 = vsel %vm208, %v171, 0
      %v213 = vsel %vm208, %v172, 0
      %v216 = vsel %vm208, %v173, 0
      %v219 = vsel %vm208, %v174, 0
      %v222 = vsel %vm208, %v175, 0
      %v225 = vsel %vm208, %v176, 0
      %v228 = vsel %vm208, %v177, 0
      %v231 = vsel %vm208, %v178, 0
      %v234 = vsel %vm208, %v179, 0
      %v237 = vsel %vm208, %v180, 0
      %v240 = vsel %vm208, %v181, 0
      %v243 = vsel %vm208, %v182, 0
      %v246 = vsel %vm208, %v183, 0
      %v249 = vsel %vm208, %v184, 0
      %v252 = vsel %vm208, %v185, 0
      %v255 = vsel %vm208, %v186, 0
      %v258 = vsel %vm208, %v187, 0
      %v261 = vsel %vm208, %v188, 0
      %v264 = vsel %vm208, %v189, 0
      %v267 = vsel %vm208, %v190, 0
      %v270 = vsel %vm208, %v191, 0
      %v273 = vsel %vm208, %v192, 0
      %v276 = vsel %vm208, %v193, 0
      %v279 = vsel %vm208, %v194, 0
      %v282 = vsel %vm208, %v195, 0
      %v285 = vsel %vm208, %v196, 0
      %v288 = vsel %vm208, %v197, 0
      %v291 = vsel %vm208, %v198, 0
      %v294 = vsel %vm208, %v199, 0
      %v297 = vsel %vm208, %v200, 0
      %v300 = vsel %vm208, %v201, 0
      %v303 = vsel %vm208, %v202, 0
      %vm305 = vcmask 1043456
      %v307 = vsel %vm305, %v207, 0
      %309 = vmatprep.subr.mxu0 0.0
      %310 = vmatpush1.msra.mxu0 0.0
      %311 = vmatprep.subr.mxu0 0.0
      %312 = vmatpush1.msra.mxu0 0.0
      %313 = vmatprep.subr.mxu0 0.0
      %314 = vmatpush1.msra.mxu0 0.0
      %315 = vmatprep.subr.mxu0 0.0
      %316 = vmatpush1.msra.mxu0 0.0
      %317 = vmatprep.subr.mxu0 0.0
      %318 = vmatpush1.msra.mxu0 0.0
      %319 = vmatprep.subr.mxu0 0.0
      %320 = vmatpush1.msra.mxu0 0.0
      %321 = vmatprep.subr.mxu0 0.0
      %322 = vmatpush1.msra.mxu0 0.0
      %323 = vmatprep.subr.mxu0 0.0
      %324 = vmatpush1.msra.mxu0 0.0
      %325 = vmatprep.subr.mxu0 0.0
      %326 = vmatpush1.msra.mxu0 0.0
      %327 = vmatprep.subr.mxu0 0.0
      %328 = vmatpush1.msra.mxu0 0.0
      %329 = vmatprep.subr.mxu0 0.0
      %330 = vmatpush1.msra.mxu0 0.0
      %331 = vmatprep.subr.mxu0 0.0
      %332 = vmatpush1.msra.mxu0 %v307
      %333 = vmatprep.subr.mxu0 0.0
      %334 = vmatpush1.msra.mxu0 %v206
      %335 = vmatprep.subr.mxu0 0.0
      %336 = vmatpush1.msra.mxu0 %v205
      %337 = vmatprep.subr.mxu0 0.0
      %338 = vmatpush1.msra.mxu0 %v204
      %339 = vmatprep.subr.mxu0 0.0
      %340 = vmatpush1.msra.mxu0 %v203
      %341 = vmatprep.subr.mxu0 0.0
      %342 = vmatpush2.msra.mxu0 0.0
      %343 = vmatprep.subr.mxu0 0.0
      %344 = vmatpush2.msra.mxu0 0.0
      %345 = vmatprep.subr.mxu0 0.0
      %346 = vmatpush2.msra.mxu0 0.0
      %347 = vmatprep.subr.mxu0 0.0
      %348 = vmatpush2.msra.mxu0 0.0
      %349 = vmatprep.subr.mxu0 0.0
      %350 = vmatpush2.msra.mxu0 0.0
      %351 = vmatprep.subr.mxu0 0.0
      %352 = vmatpush2.msra.mxu0 0.0
      %353 = vmatprep.subr.mxu0 0.0
      %354 = vmatpush2.msra.mxu0 0.0
      %355 = vmatprep.subr.mxu0 0.0
      %356 = vmatpush2.msra.mxu0 0.0
      %357 = vmatprep.subr.mxu0 0.0
      %358 = vmatpush2.msra.mxu0 0.0
      %359 = vmatprep.subr.mxu0 0.0
      %360 = vmatpush2.msra.mxu0 0.0
      %361 = vmatprep.subr.mxu0 0.0
      %362 = vmatpush2.msra.mxu0 0.0
      %363 = vmatprep.subr.mxu0 0.0
      %364 = vmatpush2.msra.mxu0 0.0
      %365 = vmatprep.subr.mxu0 0.0
      %366 = vmatpush2.msra.mxu0 0.0
      %367 = vmatprep.subr.mxu0 0.0
      %368 = vmatpush2.msra.mxu0 0.0
      %369 = vmatprep.subr.mxu0 0.0
      %370 = vmatpush2.msra.mxu0 0.0
      %371 = vmatprep.subr.mxu0 0.0
      %372 = vmatpush2.msra.mxu0 0.0
      %373 = vmatprep.mubr.f32.mxu0 0.0
      %374 = vmatmul.mubr.f32.gmra.mxu0 %v210
      %v375 = vpop.f32.mrf.mxu0
      %v376 = vadd.f32 0.0, %v375
      %v377 = vpop.f32.mrf.mxu0
      %378 = vmatprep.mubr.f32.mxu0 0.0
      %379 = vmatmul.mubr.f32.gmra.mxu0 %v213
      %v380 = vpop.f32.mrf.mxu0
      %v381 = vadd.f32 0.0, %v380
      %v382 = vpop.f32.mrf.mxu0
      %383 = vmatprep.mubr.f32.mxu0 0.0
      %384 = vmatmul.mubr.f32.gmra.mxu0 %v216
      %v385 = vpop.f32.mrf.mxu0
      %v386 = vadd.f32 0.0, %v385
      %v387 = vpop.f32.mrf.mxu0
      %388 = vmatprep.mubr.f32.mxu0 0.0
      %389 = vmatmul.mubr.f32.gmra.mxu0 %v219
      %v390 = vpop.f32.mrf.mxu0
      %v391 = vadd.f32 0.0, %v390
      %v392 = vpop.f32.mrf.mxu0
      %393 = vmatprep.mubr.f32.mxu0 0.0
      %394 = vmatmul.mubr.f32.gmra.mxu0 %v222
      %v395 = vpop.f32.mrf.mxu0
      %v396 = vadd.f32 0.0, %v395
      %v397 = vpop.f32.mrf.mxu0
      %398 = vmatprep.mubr.f32.mxu0 0.0
      %399 = vmatmul.mubr.f32.gmra.mxu0 %v225
      %v400 = vpop.f32.mrf.mxu0
      %v401 = vadd.f32 0.0, %v400
      %v402 = vpop.f32.mrf.mxu0
      %403 = vmatprep.mubr.f32.mxu0 0.0
      %404 = vmatmul.mubr.f32.gmra.mxu0 %v228
      %v405 = vpop.f32.mrf.mxu0
      %v406 = vadd.f32 0.0, %v405
      %v407 = vpop.f32.mrf.mxu0
      %408 = vmatprep.mubr.f32.mxu0 0.0
      %409 = vmatmul.mubr.f32.gmra.mxu0 %v231
      %v410 = vpop.f32.mrf.mxu0
      %v411 = vadd.f32 0.0, %v410
      %v412 = vpop.f32.mrf.mxu0
      %413 = vmatprep.mubr.f32.mxu0 0.0
      %414 = vmatmul.mubr.f32.gmra.mxu0 %v234
      %v415 = vpop.f32.mrf.mxu0
      %v416 = vadd.f32 0.0, %v415
      %v417 = vpop.f32.mrf.mxu0
      %418 = vmatprep.mubr.f32.mxu0 0.0
      %419 = vmatmul.mubr.f32.gmra.mxu0 %v237
      %v420 = vpop.f32.mrf.mxu0
      %v421 = vadd.f32 0.0, %v420
      %v422 = vpop.f32.mrf.mxu0
      %423 = vmatprep.mubr.f32.mxu0 0.0
      %424 = vmatmul.mubr.f32.gmra.mxu0 %v240
      %v425 = vpop.f32.mrf.mxu0
      %v426 = vadd.f32 0.0, %v425
      %v427 = vpop.f32.mrf.mxu0
      %428 = vmatprep.mubr.f32.mxu0 0.0
      %429 = vmatmul.mubr.f32.gmra.mxu0 %v243
      %v430 = vpop.f32.mrf.mxu0
      %v431 = vadd.f32 0.0, %v430
      %v432 = vpop.f32.mrf.mxu0
      %433 = vmatprep.mubr.f32.mxu0 0.0
      %434 = vmatmul.mubr.f32.gmra.mxu0 %v246
      %v435 = vpop.f32.mrf.mxu0
      %v436 = vadd.f32 0.0, %v435
      %v437 = vpop.f32.mrf.mxu0
      %438 = vmatprep.mubr.f32.mxu0 0.0
      %439 = vmatmul.mubr.f32.gmra.mxu0 %v249
      %v440 = vpop.f32.mrf.mxu0
      %v441 = vadd.f32 0.0, %v440
      %v442 = vpop.f32.mrf.mxu0
      %443 = vmatprep.mubr.f32.mxu0 0.0
      %444 = vmatmul.mubr.f32.gmra.mxu0 %v252
      %v445 = vpop.f32.mrf.mxu0
      %v446 = vadd.f32 0.0, %v445
      %v447 = vpop.f32.mrf.mxu0
      %448 = vmatprep.mubr.f32.mxu0 0.0
      %449 = vmatmul.mubr.f32.gmra.mxu0 %v255
      %v450 = vpop.f32.mrf.mxu0
      %v451 = vadd.f32 0.0, %v450
      %v452 = vpop.f32.mrf.mxu0
      %453 = vmatprep.mubr.f32.mxu0 0.0
      %454 = vmatmul.mubr.f32.gmra.mxu0 %v258
      %v455 = vpop.f32.mrf.mxu0
      %v456 = vadd.f32 0.0, %v455
      %v457 = vpop.f32.mrf.mxu0
      %458 = vmatprep.mubr.f32.mxu0 0.0
      %459 = vmatmul.mubr.f32.gmra.mxu0 %v261
      %v460 = vpop.f32.mrf.mxu0
      %v461 = vadd.f32 0.0, %v460
      %v462 = vpop.f32.mrf.mxu0
      %463 = vmatprep.mubr.f32.mxu0 0.0
      %464 = vmatmul.mubr.f32.gmra.mxu0 %v264
      %v465 = vpop.f32.mrf.mxu0
      %v466 = vadd.f32 0.0, %v465
      %v467 = vpop.f32.mrf.mxu0
      %468 = vmatprep.mubr.f32.mxu0 0.0
      %469 = vmatmul.mubr.f32.gmra.mxu0 %v267
      %v470 = vpop.f32.mrf.mxu0
      %v471 = vadd.f32 0.0, %v470
      %v472 = vpop.f32.mrf.mxu0
      %473 = vmatprep.mubr.f32.mxu0 0.0
      %474 = vmatmul.mubr.f32.gmra.mxu0 %v270
      %v475 = vpop.f32.mrf.mxu0
      %v476 = vadd.f32 0.0, %v475
      %v477 = vpop.f32.mrf.mxu0
      %478 = vmatprep.mubr.f32.mxu0 0.0
      %479 = vmatmul.mubr.f32.gmra.mxu0 %v273
      %v480 = vpop.f32.mrf.mxu0
      %v481 = vadd.f32 0.0, %v480
      %v482 = vpop.f32.mrf.mxu0
      %483 = vmatprep.mubr.f32.mxu0 0.0
      %484 = vmatmul.mubr.f32.gmra.mxu0 %v276
      %v485 = vpop.f32.mrf.mxu0
      %v486 = vadd.f32 0.0, %v485
      %v487 = vpop.f32.mrf.mxu0
      %488 = vmatprep.mubr.f32.mxu0 0.0
      %489 = vmatmul.mubr.f32.gmra.mxu0 %v279
      %v490 = vpop.f32.mrf.mxu0
      %v491 = vadd.f32 0.0, %v490
      %v492 = vpop.f32.mrf.mxu0
      %493 = vmatprep.mubr.f32.mxu0 0.0
      %494 = vmatmul.mubr.f32.gmra.mxu0 %v282
      %v495 = vpop.f32.mrf.mxu0
      %v496 = vadd.f32 0.0, %v495
      %v497 = vpop.f32.mrf.mxu0
      %498 = vmatprep.mubr.f32.mxu0 0.0
      %499 = vmatmul.mubr.f32.gmra.mxu0 %v285
      %v500 = vpop.f32.mrf.mxu0
      %v501 = vadd.f32 0.0, %v500
      %v502 = vpop.f32.mrf.mxu0
      %503 = vmatprep.mubr.f32.mxu0 0.0
      %504 = vmatmul.mubr.f32.gmra.mxu0 %v288
      %v505 = vpop.f32.mrf.mxu0
      %v506 = vadd.f32 0.0, %v505
      %v507 = vpop.f32.mrf.mxu0
      %508 = vmatprep.mubr.f32.mxu0 0.0
      %509 = vmatmul.mubr.f32.gmra.mxu0 %v291
      %v510 = vpop.f32.mrf.mxu0
      %v511 = vadd.f32 0.0, %v510
      %v512 = vpop.f32.mrf.mxu0
      %513 = vmatprep.mubr.f32.mxu0 0.0
      %514 = vmatmul.mubr.f32.gmra.mxu0 %v294
      %v515 = vpop.f32.mrf.mxu0
      %v516 = vadd.f32 0.0, %v515
      %v517 = vpop.f32.mrf.mxu0
      %518 = vmatprep.mubr.f32.mxu0 0.0
      %519 = vmatmul.mubr.f32.gmra.mxu0 %v297
      %v520 = vpop.f32.mrf.mxu0
      %v521 = vadd.f32 0.0, %v520
      %v522 = vpop.f32.mrf.mxu0
      %523 = vmatprep.mubr.f32.mxu0 0.0
      %524 = vmatmul.mubr.f32.gmra.mxu0 %v300
      %v525 = vpop.f32.mrf.mxu0
      %v526 = vadd.f32 0.0, %v525
      %v527 = vpop.f32.mrf.mxu0
      %528 = vmatprep.mubr.f32.mxu0 0.0
      %529 = vmatmul.mubr.f32.gmra.mxu0 %v303
      %v530 = vpop.f32.mrf.mxu0
      %v531 = vadd.f32 0.0, %v530
      %v532 = vpop.f32.mrf.mxu0
      %533 = vdwg.mxu0
      %v534 = vmax.f32 %v376, %v416
      %v535 = vmax.f32 %v381, %v421
      %v536 = vmax.f32 %v386, %v426
      %v537 = vmax.f32 %v391, %v431
      %v538 = vmax.f32 %v396, %v436
      %v539 = vmax.f32 %v401, %v441
      %v540 = vmax.f32 %v406, %v446
      %v541 = vmax.f32 %v411, %v451
      %v542 = vmax.f32 %v534, %v456
      %v543 = vmax.f32 %v535, %v461
      %v544 = vmax.f32 %v536, %v466
      %v545 = vmax.f32 %v537, %v471
      %v546 = vmax.f32 %v538, %v476
      %v547 = vmax.f32 %v539, %v481
      %v548 = vmax.f32 %v540, %v486
      %v549 = vmax.f32 %v541, %v491
      %v550 = vmax.f32 %v542, %v496
      %v551 = vmax.f32 %v543, %v501
      %v552 = vmax.f32 %v544, %v506
      %v553 = vmax.f32 %v545, %v511
      %v554 = vmax.f32 %v546, %v516
      %v555 = vmax.f32 %v547, %v521
      %v556 = vmax.f32 %v548, %v526
      %v557 = vmax.f32 %v549, %v531
      %v558 = vld [vmem:[%s2] sm:$0x1]
      %v560 = vlaneseq
      %v561 = vshrl.u32 %v560, 7
      %v562 = vsub.s32 0, %v561
      %v563 = vrot.slane %v558, %v562
      %v565 = vadd.f32 %v550, %v563
      %v566 = vadd.f32 %v551, %v563
      %v567 = vadd.f32 %v552, %v563
      %v568 = vadd.f32 %v553, %v563
      %v569 = vadd.f32 %v554, %v563
      %v570 = vadd.f32 %v555, %v563
      %v571 = vadd.f32 %v556, %v563
      %v572 = vadd.f32 %v557, %v563
      %v573 = vmax.f32 %v565, 0.0
      %v574 = vmax.f32 %v566, 0.0
      %v575 = vmax.f32 %v567, 0.0
      %v576 = vmax.f32 %v568, 0.0
      %v577 = vmax.f32 %v569, 0.0
      %v578 = vmax.f32 %v570, 0.0
      %v579 = vmax.f32 %v571, 0.0
      %v580 = vmax.f32 %v572, 0.0
      %vm581 = vcmask 64512
      %582 = vst.msk [vmem:[%s170] sm:$0xff] %vm581, %v573
      %583 = vst.msk [vmem:[%s170 + $0x8] sm:$0xff] %vm581, %v574
      %584 = vst.msk [vmem:[%s170 + $0x10] sm:$0xff] %vm581, %v575
      %585 = vst.msk [vmem:[%s170 + $0x18] sm:$0xff] %vm581, %v576
      %586 = vst.msk [vmem:[%s170 + $0x20] sm:$0xff] %vm581, %v577
      %587 = vst.msk [vmem:[%s170 + $0x28] sm:$0xff] %vm581, %v578
      %588 = vst.msk [vmem:[%s170 + $0x30] sm:$0xff] %vm581, %v579
      %589 = vst.msk [vmem:[%s170 + $0x38] sm:$0xff] %vm581, %v580
      %p590 = scmp.lt.s32.totalorder %s14, 1
      %s591 = scalar_select %p590, %s14, 1
      %s592 = smul.addr %s591, 8
      %s593 = smul.addr %s592, 8
      %s594 = scalar_lea.vmem %s3, %s593
      // Predicated region
      $region33: #{_lambda_.1} parent=31 // pred_check
        %p595 = pneg %p100
      $region34: #{_lambda_.1} parent=31 // pred_check_branch
        %597 = sbr.rel (%p595) target = $region36
      $region35: #{_lambda_.1} parent=31 // pred_region
        _
      $region36: #{_lambda_.1} parent=31 // pred_fallthru
        _
    $region32: #{_lambda_.1} parent=5 // pred_fallthru
      _
    %p598 = scmp.le.s32.totalorder 2, %s9
    // Predicated region
    $region37: #{_lambda_.1} parent=5 // pred_check
      %p599 = pneg %p598
    $region38: #{_lambda_.1} parent=5 // pred_check_branch
      %601 = sbr.rel (%p599) target = $region40
    $region39: #{_lambda_.1} parent=5 // pred_region
      %s602 = ssub.s32 %s9, 2
      // Predicated region
      $region41: #{_lambda_.1} parent=39 // pred_check
        %p603 = pneg %p106
      $region42: #{_lambda_.1} parent=39 // pred_check_branch
        %605 = sbr.rel (%p603) target = $region44
      $region43: #{_lambda_.1} parent=39 // pred_region
        %p606 = scmp.lt.s32.totalorder %s15, 1
        %s607 = scalar_select %p606, %s15, 1
        %s608 = smul.addr %s607, 8
        %s609 = smul.addr %s608, 8
        %s610 = scalar_lea.vmem %s3, %s609
      $region44: #{_lambda_.1} parent=39 // pred_fallthru
        _
    $region40: #{_lambda_.1} parent=5 // pred_fallthru
      _
  $region6: #{_lambda_.1} parent=0 // loop_footer
    %s13 = sadd.s32 1, %s9
  $region7: #{_lambda_.1} parent=0 // loop_footer_branch
    %8 = sbr.rel target = $region3
  $region8: #{_lambda_.1} parent=0 // loop_exit
    _

</llo_original>
